<compile_context>
chip_gen: v7x
topology: tpu7x:2x2x1
jax: 0.10.0
libtpu: 0.0.40
codegen_flags: <defaults>
</compile_context>

<pallas_src>
import jax
import jax.numpy as jnp
from jax.experimental import pallas as pl
from jax.experimental.pallas import tpu as pltpu


def _bi_interaction_kernel(x_ref, o_ref):
    """x_ref: (TB, F, D) VMEM tile; o_ref: (TB, D) VMEM tile.

    NOTE: on the last (partial) batch block the padding rows compute on
    whatever happens to be in VMEM; this is benign -- rows are independent and
    padded output rows are never written back.  Do not "fix" with a mask.
    """
    num_fields = x_ref.shape[1]
    v = x_ref[:, 0, :].astype(jnp.float32)            # (TB, D) slab
    acc = v
    sq = v * v
    for f in range(1, num_fields):                    # F is static -> unrolled
        v = x_ref[:, f, :].astype(jnp.float32)
        acc = acc + v
        sq = sq + v * v
    o_ref[...] = (0.5 * (acc * acc - sq)).astype(o_ref.dtype)


def _sublane_pack(itemsize: int) -> int:
    # f32 -> 8 rows / sublane tile, bf16 -> 16, int8/fp8 -> 32.
    return max(8, 32 // max(int(itemsize), 1))


def _round_up(x: int, m: int) -> int:
    return ((x + m - 1) // m) * m


def _choose_batch_tile(B, F, D, itemsize, target_block_bytes, min_grid_steps=2):
    """Pick a batch tile ~target_block_bytes of *padded* VMEM per input block,
    rounded to the dtype sublane pack, while guaranteeing >= min_grid_steps
    grid steps whenever the batch is big enough to split."""
    pack = _sublane_pack(itemsize)
    f_pad = _round_up(F, pack)          # F sits on the sublane axis of each (F, D) tile
    d_pad = _round_up(D, 128)           # lane padding
    row_bytes = max(f_pad * d_pad * itemsize, 1)
    tb = max(1, target_block_bytes // row_bytes)
    if B > pack:
        # Keep at least min_grid_steps steps: enables DMA double-buffer overlap
        # and lets v7x's two TensorCores shard the "parallel" batch axis.
        tb = min(tb, -(-B // min_grid_steps))
    tb = min(tb, B)
    if tb < B:
        tb = max(pack, (tb // pack) * pack)     # dtype-aware sublane rounding
        tb = min(tb, B)
    return tb


def bi_interaction(feat_emb_value: jax.Array, *,
                   target_block_bytes: int = 8 * 1024 * 1024) -> jax.Array:
    """Pallas TPU implementation of NFM bi-interaction pooling.

    feat_emb_value: (B, F, D) float array.
    returns: (B, D) array, same dtype as input.
    """
    B, F, D = feat_emb_value.shape
    itemsize = jnp.dtype(feat_emb_value.dtype).itemsize
    tb = _choose_batch_tile(B, F, D, itemsize, target_block_bytes)
    grid = (pl.cdiv(B, tb),)

    # Explicit VMEM budget: double-buffered (padded) input + output blocks
    # plus slack.  Floor of 32 MiB so >=8 MiB blocks compile on v5e's 16 MiB
    # scoped default; cap at 48 MiB to stay under v7x's 64 MiB physical VMEM.
    pack = _sublane_pack(itemsize)
    f_pad = _round_up(F, pack)
    d_pad = _round_up(D, 128)
    in_block_bytes = tb * f_pad * d_pad * itemsize
    out_block_bytes = tb * d_pad * itemsize
    vmem_limit = int(min(max(2 * (in_block_bytes + out_block_bytes) + (2 << 20),
                             32 << 20),
                         48 << 20))

    cost = pl.CostEstimate(
        flops=4 * B * F * D,                              # per-field add/mul + combine
        transcendentals=0,
        bytes_accessed=(B * F * D + B * D) * itemsize,    # stream in + write out
    )

    return pl.pallas_call(
        _bi_interaction_kernel,
        out_shape=jax.ShapeDtypeStruct((B, D), feat_emb_value.dtype),
        grid=grid,
        in_specs=[pl.BlockSpec((tb, F, D), lambda i: (i, 0, 0))],
        out_specs=pl.BlockSpec((tb, D), lambda i: (i, 0)),
        compiler_params=pltpu.CompilerParams(
            dimension_semantics=("parallel",),            # megacore sharding on v7x
            vmem_limit_bytes=vmem_limit,
        ),
        cost_estimate=cost,
    )(feat_emb_value)


def bi_interaction_ref(x: jax.Array) -> jax.Array:
    # Pure-JAX reference for sanity checking.
    xf = x.astype(jnp.float32)
    s = jnp.sum(xf, axis=1)
    sq = jnp.sum(xf * xf, axis=1)
    return (0.5 * (s * s - sq)).astype(x.dtype)


if __name__ == "__main__":
    # BiInteractionLayer has no parameters; only a deterministic input.
    key = jax.random.PRNGKey(0)
    B, F, D = 60, 8, 128   # batch, num_fields, embed_dim (lane-dense D)
    x = jax.random.normal(key, (B, F, D), dtype=jnp.float32)

    ref = bi_interaction_ref(x)

    # Default path: ~8 MiB target, grid >= 2, partial last block (60 = 2*24 + 12).
    out = jax.block_until_ready(bi_interaction(x))
    assert out.shape == (B, D)
    assert jnp.allclose(out, ref, atol=1e-5, rtol=1e-5)

    # Tiny block target exercises the deeper multi-step pipeline path.
    out_small = jax.block_until_ready(bi_interaction(x, target_block_bytes=32 * 1024))
    assert jnp.allclose(out_small, ref, atol=1e-5, rtol=1e-5)

    # bf16 path exercises the 16-row sublane pack and f32 in-kernel accumulation.
    xb = x.astype(jnp.bfloat16)
    refb = bi_interaction_ref(xb)
    outb = jax.block_until_ready(bi_interaction(xb))
    assert jnp.allclose(outb.astype(jnp.float32), refb.astype(jnp.float32),
                        atol=5e-2, rtol=5e-2)

    print("KERNEL_OK")
</pallas_src>

<mosaic_0001>
module attributes {stable_mosaic.version = 11 : i64} {
  func.func @_bi_interaction_kernel(%arg0: i32, %arg1: memref<24x8x128xf32, #tpu.memory_space<vmem>>, %arg2: memref<24x128xf32, #tpu.memory_space<vmem>>) attributes {dimension_semantics = [#tpu.dimension_semantics<parallel>], iteration_bounds = array<i64: 3>, scalar_prefetch = 0 : i64, scratch_operands = 0 : i64, tpu.core_type = #tpu.core_type<tc>, window_params = [{transform_indices = @transform_0, window_bounds = array<i64: 24, 8, 128>}, {transform_indices = @transform_1, window_bounds = array<i64: 24, 128>}]} {
    %c0 = arith.constant 0 : index
    %c0_0 = arith.constant 0 : index
    %c0_1 = arith.constant 0 : index
    %0 = vector.load %arg1[%c0, %c0_0, %c0_1] : memref<24x8x128xf32, #tpu.memory_space<vmem>>, vector<24x1x128xf32>
    %1 = vector.shape_cast %0 : vector<24x1x128xf32> to vector<24x128xf32>
    %2 = arith.mulf %1, %1 : vector<24x128xf32>
    %c0_2 = arith.constant 0 : index
    %c1 = arith.constant 1 : index
    %c0_3 = arith.constant 0 : index
    %3 = vector.load %arg1[%c0_2, %c1, %c0_3] : memref<24x8x128xf32, #tpu.memory_space<vmem>>, vector<24x1x128xf32>
    %4 = vector.shape_cast %3 : vector<24x1x128xf32> to vector<24x128xf32>
    %5 = arith.addf %1, %4 : vector<24x128xf32>
    %6 = arith.mulf %4, %4 : vector<24x128xf32>
    %7 = arith.addf %2, %6 : vector<24x128xf32>
    %c0_4 = arith.constant 0 : index
    %c2 = arith.constant 2 : index
    %c0_5 = arith.constant 0 : index
    %8 = vector.load %arg1[%c0_4, %c2, %c0_5] : memref<24x8x128xf32, #tpu.memory_space<vmem>>, vector<24x1x128xf32>
    %9 = vector.shape_cast %8 : vector<24x1x128xf32> to vector<24x128xf32>
    %10 = arith.addf %5, %9 : vector<24x128xf32>
    %11 = arith.mulf %9, %9 : vector<24x128xf32>
    %12 = arith.addf %7, %11 : vector<24x128xf32>
    %c0_6 = arith.constant 0 : index
    %c3 = arith.constant 3 : index
    %c0_7 = arith.constant 0 : index
    %13 = vector.load %arg1[%c0_6, %c3, %c0_7] : memref<24x8x128xf32, #tpu.memory_space<vmem>>, vector<24x1x128xf32>
    %14 = vector.shape_cast %13 : vector<24x1x128xf32> to vector<24x128xf32>
    %15 = arith.addf %10, %14 : vector<24x128xf32>
    %16 = arith.mulf %14, %14 : vector<24x128xf32>
    %17 = arith.addf %12, %16 : vector<24x128xf32>
    %c0_8 = arith.constant 0 : index
    %c4 = arith.constant 4 : index
    %c0_9 = arith.constant 0 : index
    %18 = vector.load %arg1[%c0_8, %c4, %c0_9] : memref<24x8x128xf32, #tpu.memory_space<vmem>>, vector<24x1x128xf32>
    %19 = vector.shape_cast %18 : vector<24x1x128xf32> to vector<24x128xf32>
    %20 = arith.addf %15, %19 : vector<24x128xf32>
    %21 = arith.mulf %19, %19 : vector<24x128xf32>
    %22 = arith.addf %17, %21 : vector<24x128xf32>
    %c0_10 = arith.constant 0 : index
    %c5 = arith.constant 5 : index
    %c0_11 = arith.constant 0 : index
    %23 = vector.load %arg1[%c0_10, %c5, %c0_11] : memref<24x8x128xf32, #tpu.memory_space<vmem>>, vector<24x1x128xf32>
    %24 = vector.shape_cast %23 : vector<24x1x128xf32> to vector<24x128xf32>
    %25 = arith.addf %20, %24 : vector<24x128xf32>
    %26 = arith.mulf %24, %24 : vector<24x128xf32>
    %27 = arith.addf %22, %26 : vector<24x128xf32>
    %c0_12 = arith.constant 0 : index
    %c6 = arith.constant 6 : index
    %c0_13 = arith.constant 0 : index
    %28 = vector.load %arg1[%c0_12, %c6, %c0_13] : memref<24x8x128xf32, #tpu.memory_space<vmem>>, vector<24x1x128xf32>
    %29 = vector.shape_cast %28 : vector<24x1x128xf32> to vector<24x128xf32>
    %30 = arith.addf %25, %29 : vector<24x128xf32>
    %31 = arith.mulf %29, %29 : vector<24x128xf32>
    %32 = arith.addf %27, %31 : vector<24x128xf32>
    %c0_14 = arith.constant 0 : index
    %c7 = arith.constant 7 : index
    %c0_15 = arith.constant 0 : index
    %33 = vector.load %arg1[%c0_14, %c7, %c0_15] : memref<24x8x128xf32, #tpu.memory_space<vmem>>, vector<24x1x128xf32>
    %34 = vector.shape_cast %33 : vector<24x1x128xf32> to vector<24x128xf32>
    %35 = arith.addf %30, %34 : vector<24x128xf32>
    %36 = arith.mulf %34, %34 : vector<24x128xf32>
    %37 = arith.addf %32, %36 : vector<24x128xf32>
    %38 = arith.mulf %35, %35 : vector<24x128xf32>
    %39 = arith.subf %38, %37 : vector<24x128xf32>
    %cst = arith.constant 5.000000e-01 : f32
    %40 = vector.broadcast %cst : f32 to vector<24x128xf32>
    %41 = arith.mulf %40, %39 : vector<24x128xf32>
    %c0_16 = arith.constant 0 : index
    %c0_17 = arith.constant 0 : index
    %42 = vector.load %arg2[%c0_16, %c0_17] : memref<24x128xf32, #tpu.memory_space<vmem>>, vector<24x128xf32>
    tpu.vector_store %arg2[%c0_16, %c0_17], %41 {strides = array<i32>} : memref<24x128xf32, #tpu.memory_space<vmem>>, vector<24x128xf32>,
    return
  }
  func.func @transform_0(%arg0: i32) -> (i32, i32, i32) {
    %c0_i32 = arith.constant 0 : i32
    %c0_i32_0 = arith.constant 0 : i32
    %c0_i32_1 = arith.constant 0 : i32
    return %arg0, %c0_i32, %c0_i32_0 : i32, i32, i32
  }
  func.func @transform_1(%arg0: i32) -> (i32, i32) {
    %c0_i32 = arith.constant 0 : i32
    %c0_i32_0 = arith.constant 0 : i32
    return %arg0, %c0_i32 : i32, i32
  }
}

</mosaic_0001>

<llo_original>
// kernel: tpu_custom_call.1
$region0: #{tpu_custom_call.1}
  #allocation0 [shape = 'u32[]', space=smem, size = 0x4, offset = 0x4, fixed_abs, tag = 'smem constant byte address 0x4 - core index']
  #allocation1 [shape = 'u32[144,128]{1,0:T(1,128)}', space=vmem, size = 0x12000, scoped, tag = 'internal scratch']
  %s0 = inlined_call_operand.hbm [shape: f32[60,8,128], index: 0, kind: input, shape index: {}]
  %s1 = inlined_call_operand.hbm [shape: f32[60,128], index: 1, kind: output, shape index: {}]
  %s2 = sld [smem:[#allocation0]]
  $region41: #{tpu_custom_call.1} parent=0
    _
  %s4 = ssub.s32 1, %s2
  %s5 = scalar_select 0, %s4, %s2
  $region1: #{tpu_custom_call.1} parent=0
    #allocation2 [shape = 'u8[196608]{0}', space=vmem, size = 0x30000, scoped, tag = 'input window, operand 0']
    #allocation3 [shape = 's32[2]{0}', space=sflag, size = 0x8, scoped, tag = 'scoped memory for tpu_custom_call.1']
    #allocation4 [shape = 's32[2]{0}', space=sflag, size = 0x8, scoped, tag = 'scoped memory for tpu_custom_call.1']
    #allocation5 [shape = 'u8[24576]{0}', space=vmem, size = 0x6000, scoped, tag = 'output window, operand 0']
    %6 = vsyncpa [#allocation3], 0
    %s7 = scalar_lea.sflag [#allocation3], 1
    %8 = vsyncpa %s7, 0
    %9 = vsyncpa [#allocation4], 0
    %s10 = scalar_lea.sflag [#allocation4], 1
    %11 = vsyncpa %s10, 0
    loop: start=0, step=1, limit=5
    $region2: #{tpu_custom_call.1} parent=1 // loop_pre_header
      _
    $region3: #{tpu_custom_call.1} parent=1 // loop_header
      %s13 = sphi 0, %s17
      %p14 = scmp.ge.s32.totalorder %s13, 5
      %s23 = sphi 0, %s25
      %s26 = sphi 0, %s23
      %s27 = sphi 0, %s26
      %s43 = sphi 0, %s27
      %s49 = sphi 0, %s51
      %s52 = sphi 0, %s49
      %s53 = sphi 0, %s52
      %s69 = sphi 0, %s53
    $region4: #{tpu_custom_call.1} parent=1 // loop_header_branch
      %16 = sbr.rel (%p14) target = $region8
    $region5: #{tpu_custom_call.1} parent=1 // loop_body
      %s18 = ssub.s32 %s13, 1
      %s19 = ssub.s32 %s13, 2
      %s20 = sadd.s32 %s13, 1
      %s21 = ssub.s32 %s13, %s20
      %p22 = scmp.eq.s32.totalorder %s21, 0
      %s24 = sadd.s32 %s23, 1
      %s25 = scalar_select %p22, %s23, %s24
      %p28 = pneg %p22
      %p29 = scmp.eq.s32.totalorder %s13, 2
      %p30 = por %p28, %p29
      %p31 = scmp.ne.s32.totalorder %s23, %s26
      %p32 = scmp.eq.s32.totalorder %s13, 0
      %p33 = por %p31, %p32
      %p34 = scmp.ne.s32.totalorder %s23, %s26
      %p35 = scmp.eq.s32.totalorder %s18, 2
      %p36 = por %p34, %p35
      %p37 = scmp.ne.s32.totalorder %s26, %s27
      %p38 = scmp.eq.s32.totalorder %s18, 0
      %p39 = por %p37, %p38
      %p40 = scmp.ne.s32.totalorder %s26, %s27
      %p41 = scmp.eq.s32.totalorder %s19, 2
      %p42 = por %p40, %p41
      %p44 = scmp.ne.s32.totalorder %s27, %s43
      %p45 = scmp.eq.s32.totalorder %s19, 0
      %p46 = por %p44, %p45
      %s47 = ssub.s32 %s13, %s20
      %p48 = scmp.eq.s32.totalorder %s47, 0
      %s50 = sadd.s32 %s49, 1
      %s51 = scalar_select %p48, %s49, %s50
      %p54 = pneg %p48
      %p55 = scmp.eq.s32.totalorder %s13, 2
      %p56 = por %p54, %p55
      %p57 = scmp.ne.s32.totalorder %s49, %s52
      %p58 = scmp.eq.s32.totalorder %s13, 0
      %p59 = por %p57, %p58
      %p60 = scmp.ne.s32.totalorder %s49, %s52
      %p61 = scmp.eq.s32.totalorder %s18, 2
      %p62 = por %p60, %p61
      %p63 = scmp.ne.s32.totalorder %s52, %s53
      %p64 = scmp.eq.s32.totalorder %s18, 0
      %p65 = por %p63, %p64
      %p66 = scmp.ne.s32.totalorder %s52, %s53
      %p67 = scmp.eq.s32.totalorder %s19, 2
      %p68 = por %p66, %p67
      %p70 = scmp.ne.s32.totalorder %s53, %s69
      %p71 = scmp.eq.s32.totalorder %s19, 0
      %p72 = por %p70, %p71
      %p73 = scmp.le.s32.totalorder 1, %s13
      %p74 = scmp.lt.s32.totalorder %s13, 4
      %p75 = pnand %p73, %p74
      %p76 = pneg %p75
      // Predicated region
      $region9: #{tpu_custom_call.1} parent=5 // pred_check
        _
      $region10: #{tpu_custom_call.1} parent=5 // pred_check_branch
        %78 = sbr.rel (%p75) target = $region12
      $region11: #{tpu_custom_call.1} parent=5 // pred_region
        %s79 = ssub.s32 %s13, 1
      $region12: #{tpu_custom_call.1} parent=5 // pred_fallthru
        _
      %p80 = scmp.lt.s32.totalorder %s13, 3
      // Predicated region
      $region13: #{tpu_custom_call.1} parent=5 // pred_check
        %p81 = pneg %p80
      $region14: #{tpu_custom_call.1} parent=5 // pred_check_branch
        %83 = sbr.rel (%p81) target = $region16
      $region15: #{tpu_custom_call.1} parent=5 // pred_region
        // Predicated region
        $region17: #{tpu_custom_call.1} parent=15 // pred_check
          %p84 = pneg %p33
        $region18: #{tpu_custom_call.1} parent=15 // pred_check_branch
          %86 = sbr.rel (%p84) target = $region20
        $region19: #{tpu_custom_call.1} parent=15 // pred_region
          %s87 = sand.u32 %s23, 1
          %s88 = scalar_lea.sflag [#allocation3], %s87
          %s89 = sand.u32 %s23, 1
          %s90 = smul.addr %s89, 192
          %s91 = scalar_lea.vmem [#allocation2], %s90
          %s92 = smul.u32 24, %s13
          %s93 = ssub.s32 60, %s92
          %p94 = scmp.lt.s32.totalorder %s93, 24
          %s95 = scalar_select %p94, %s93, 24
          %s96 = smul.u32 128, %s95
          %s98 = ssub.s32 3072, %s96
          %99 = vsyncadd %s88, %s98
          %p100 = scmp.ne.s32.totalorder 0, %s96
          %s101 = smul.addr %s92, 128
          %s102 = scalar_lea.hbm %s0, %s101
          %s103 = smul.u32 8, %s95
          %s104 = sshll.u32 %s91, 4
          %s105 = int_to_ptr.vmem [resolvable:$true] %s104
          %s106 = sshll.u32 %s103, 4
          %110 = dma.hbm_to_vmem [thread:$0]  (%p100), %s102, %s106, %s105, %s88, 128, 128, 8
        $region20: #{tpu_custom_call.1} parent=15 // pred_fallthru
          _
      $region16: #{tpu_custom_call.1} parent=5 // pred_fallthru
        _
      %p111 = scmp.le.s32.totalorder 1, %s13
      %p112 = scmp.lt.s32.totalorder %s13, 4
      %p113 = pnand %p111, %p112
      %p114 = pneg %p113
      // Predicated region
      $region21: #{tpu_custom_call.1} parent=5 // pred_check
        _
      $region22: #{tpu_custom_call.1} parent=5 // pred_check_branch
        %116 = sbr.rel (%p113) target = $region24
      $region23: #{tpu_custom_call.1} parent=5 // pred_region
        %s117 = ssub.s32 %s13, 1
        %s118 = sand.u32 %s26, 1
        %s119 = scalar_lea.sflag [#allocation3], %s118
        %s120 = sand.u32 %s26, 1
        %s121 = smul.addr %s120, 192
        %s122 = scalar_lea.vmem [#allocation2], %s121
        // Predicated region
        $region25: #{tpu_custom_call.1} parent=23 // pred_check
          %p123 = pneg %p39
        $region26: #{tpu_custom_call.1} parent=23 // pred_check_branch
          %125 = sbr.rel (%p123) target = $region28
        $region27: #{tpu_custom_call.1} parent=23 // pred_region
          %126 = dma.done %s119, 3072
        $region28: #{tpu_custom_call.1} parent=23 // pred_fallthru
          _
        %s127 = sand.u32 %s26, 1
        %s128 = scalar_lea.sflag [#allocation3], %s127
        %s129 = sand.u32 %s26, 1
        %s130 = smul.addr %s129, 192
        %s131 = scalar_lea.vmem [#allocation2], %s130
        %p132 = pneg %p39
        %p133 = pneg %p36
        %p134 = pneg %p65
        %p135 = pneg %p62
        %s136 = sand.u32 %s52, 1
        %s137 = scalar_lea.sflag [#allocation4], %s136
        %s138 = sand.u32 %s52, 1
        %s139 = smul.addr %s138, 24
        %s140 = scalar_lea.vmem [#allocation5], %s139
        %s141 = smul.u32 24, %s18
        %s142 = ssub.s32 60, %s141
        %p143 = scmp.lt.s32.totalorder %s142, 24
        %s144 = scalar_select %p143, %s142, 24
        %s145 = smul.u32 128, %s144
        %s146 = smul.u32 3, %s18
        %s147 = ssub.s32 8, %s146
        %p148 = scmp.lt.s32.totalorder %s147, 3
        %s149 = scalar_select %p148, %s147, 3
        %s150 = smul.u32 128, %s149
        %v151 = vld [vmem:[%s122] sm:$0x1]
        %v152 = vld [vmem:[%s122 + $0x8] sm:$0x1]
        %v153 = vld [vmem:[%s122 + $0x10] sm:$0x1]
        %v154 = vld [vmem:[%s122 + $0x18] sm:$0x1]
        %v155 = vld [vmem:[%s122 + $0x20] sm:$0x1]
        %v156 = vld [vmem:[%s122 + $0x28] sm:$0x1]
        %v157 = vld [vmem:[%s122 + $0x30] sm:$0x1]
        %v158 = vld [vmem:[%s122 + $0x38] sm:$0x1]
        %v159 = vld [vmem:[%s122 + $0x40] sm:$0x1]
        %v160 = vld [vmem:[%s122 + $0x48] sm:$0x1]
        %v161 = vld [vmem:[%s122 + $0x50] sm:$0x1]
        %v162 = vld [vmem:[%s122 + $0x58] sm:$0x1]
        %v163 = vld [vmem:[%s122 + $0x60] sm:$0x1]
        %v164 = vld [vmem:[%s122 + $0x68] sm:$0x1]
        %v165 = vld [vmem:[%s122 + $0x70] sm:$0x1]
        %v166 = vld [vmem:[%s122 + $0x78] sm:$0x1]
        %v167 = vld [vmem:[%s122 + $0x80] sm:$0x1]
        %v168 = vld [vmem:[%s122 + $0x88] sm:$0x1]
        %v169 = vld [vmem:[%s122 + $0x90] sm:$0x1]
        %v170 = vld [vmem:[%s122 + $0x98] sm:$0x1]
        %v171 = vld [vmem:[%s122 + $0xa0] sm:$0x1]
        %v172 = vld [vmem:[%s122 + $0xa8] sm:$0x1]
        %v173 = vld [vmem:[%s122 + $0xb0] sm:$0x1]
        %v174 = vld [vmem:[%s122 + $0xb8] sm:$0x1]
        %v175 = vmul.f32 %v151, %v151
        %v176 = vmul.f32 %v152, %v152
        %v177 = vmul.f32 %v153, %v153
        %v178 = vmul.f32 %v154, %v154
        %v179 = vmul.f32 %v155, %v155
        %v180 = vmul.f32 %v156, %v156
        %v181 = vmul.f32 %v157, %v157
        %v182 = vmul.f32 %v158, %v158
        %v183 = vmul.f32 %v159, %v159
        %v184 = vmul.f32 %v160, %v160
        %v185 = vmul.f32 %v161, %v161
        %v186 = vmul.f32 %v162, %v162
        %v187 = vmul.f32 %v163, %v163
        %v188 = vmul.f32 %v164, %v164
        %v189 = vmul.f32 %v165, %v165
        %v190 = vmul.f32 %v166, %v166
        %v191 = vmul.f32 %v167, %v167
        %v192 = vmul.f32 %v168, %v168
        %v193 = vmul.f32 %v169, %v169
        %v194 = vmul.f32 %v170, %v170
        %v195 = vmul.f32 %v171, %v171
        %v196 = vmul.f32 %v172, %v172
        %v197 = vmul.f32 %v173, %v173
        %v198 = vmul.f32 %v174, %v174
        %v199 = vld [vmem:[%s122 + $0x1] sm:$0x1]
        %v200 = vld [vmem:[%s122 + $0x9] sm:$0x1]
        %v201 = vld [vmem:[%s122 + $0x11] sm:$0x1]
        %v202 = vld [vmem:[%s122 + $0x19] sm:$0x1]
        %v203 = vld [vmem:[%s122 + $0x21] sm:$0x1]
        %v204 = vld [vmem:[%s122 + $0x29] sm:$0x1]
        %v205 = vld [vmem:[%s122 + $0x31] sm:$0x1]
        %v206 = vld [vmem:[%s122 + $0x39] sm:$0x1]
        %v207 = vld [vmem:[%s122 + $0x41] sm:$0x1]
        %v208 = vld [vmem:[%s122 + $0x49] sm:$0x1]
        %v209 = vld [vmem:[%s122 + $0x51] sm:$0x1]
        %v210 = vld [vmem:[%s122 + $0x59] sm:$0x1]
        %v211 = vld [vmem:[%s122 + $0x61] sm:$0x1]
        %v212 = vld [vmem:[%s122 + $0x69] sm:$0x1]
        %v213 = vld [vmem:[%s122 + $0x71] sm:$0x1]
        %v214 = vld [vmem:[%s122 + $0x79] sm:$0x1]
        %v215 = vld [vmem:[%s122 + $0x81] sm:$0x1]
        %v216 = vld [vmem:[%s122 + $0x89] sm:$0x1]
        %v217 = vld [vmem:[%s122 + $0x91] sm:$0x1]
        %v218 = vld [vmem:[%s122 + $0x99] sm:$0x1]
        %v219 = vld [vmem:[%s122 + $0xa1] sm:$0x1]
        %v220 = vld [vmem:[%s122 + $0xa9] sm:$0x1]
        %v221 = vld [vmem:[%s122 + $0xb1] sm:$0x1]
        %v222 = vld [vmem:[%s122 + $0xb9] sm:$0x1]
        %v223 = vadd.f32 %v151, %v199
        %v224 = vadd.f32 %v152, %v200
        %v225 = vadd.f32 %v153, %v201
        %v226 = vadd.f32 %v154, %v202
        %v227 = vadd.f32 %v155, %v203
        %v228 = vadd.f32 %v156, %v204
        %v229 = vadd.f32 %v157, %v205
        %v230 = vadd.f32 %v158, %v206
        %v231 = vadd.f32 %v159, %v207
        %v232 = vadd.f32 %v160, %v208
        %v233 = vadd.f32 %v161, %v209
        %v234 = vadd.f32 %v162, %v210
        %v235 = vadd.f32 %v163, %v211
        %v236 = vadd.f32 %v164, %v212
        %v237 = vadd.f32 %v165, %v213
        %v238 = vadd.f32 %v166, %v214
        %v239 = vadd.f32 %v167, %v215
        %v240 = vadd.f32 %v168, %v216
        %v241 = vadd.f32 %v169, %v217
        %v242 = vadd.f32 %v170, %v218
        %v243 = vadd.f32 %v171, %v219
        %v244 = vadd.f32 %v172, %v220
        %v245 = vadd.f32 %v173, %v221
        %v246 = vadd.f32 %v174, %v222
        %v247 = vmul.f32 %v199, %v199
        %v248 = vmul.f32 %v200, %v200
        %v249 = vmul.f32 %v201, %v201
        %v250 = vmul.f32 %v202, %v202
        %v251 = vmul.f32 %v203, %v203
        %v252 = vmul.f32 %v204, %v204
        %v253 = vmul.f32 %v205, %v205
        %v254 = vmul.f32 %v206, %v206
        %v255 = vmul.f32 %v207, %v207
        %v256 = vmul.f32 %v208, %v208
        %v257 = vmul.f32 %v209, %v209
        %v258 = vmul.f32 %v210, %v210
        %v259 = vmul.f32 %v211, %v211
        %v260 = vmul.f32 %v212, %v212
        %v261 = vmul.f32 %v213, %v213
        %v262 = vmul.f32 %v214, %v214
        %v263 = vmul.f32 %v215, %v215
        %v264 = vmul.f32 %v216, %v216
        %v265 = vmul.f32 %v217, %v217
        %v266 = vmul.f32 %v218, %v218
        %v267 = vmul.f32 %v219, %v219
        %v268 = vmul.f32 %v220, %v220
        %v269 = vmul.f32 %v221, %v221
        %v270 = vmul.f32 %v222, %v222
        %v271 = vadd.f32 %v175, %v247
        %v272 = vadd.f32 %v176, %v248
        %v273 = vadd.f32 %v177, %v249
        %v274 = vadd.f32 %v178, %v250
        %v275 = vadd.f32 %v179, %v251
        %v276 = vadd.f32 %v180, %v252
        %v277 = vadd.f32 %v181, %v253
        %v278 = vadd.f32 %v182, %v254
        %v279 = vadd.f32 %v183, %v255
        %v280 = vadd.f32 %v184, %v256
        %v281 = vadd.f32 %v185, %v257
        %v282 = vadd.f32 %v186, %v258
        %v283 = vadd.f32 %v187, %v259
        %v284 = vadd.f32 %v188, %v260
        %v285 = vadd.f32 %v189, %v261
        %v286 = vadd.f32 %v190, %v262
        %v287 = vadd.f32 %v191, %v263
        %v288 = vadd.f32 %v192, %v264
        %v289 = vadd.f32 %v193, %v265
        %v290 = vadd.f32 %v194, %v266
        %v291 = vadd.f32 %v195, %v267
        %v292 = vadd.f32 %v196, %v268
        %v293 = vadd.f32 %v197, %v269
        %v294 = vadd.f32 %v198, %v270
        %v295 = vld [vmem:[%s122 + $0x2] sm:$0x1]
        %v296 = vld [vmem:[%s122 + $0xa] sm:$0x1]
        %v297 = vld [vmem:[%s122 + $0x12] sm:$0x1]
        %v298 = vld [vmem:[%s122 + $0x1a] sm:$0x1]
        %v299 = vld [vmem:[%s122 + $0x22] sm:$0x1]
        %v300 = vld [vmem:[%s122 + $0x2a] sm:$0x1]
        %v301 = vld [vmem:[%s122 + $0x32] sm:$0x1]
        %v302 = vld [vmem:[%s122 + $0x3a] sm:$0x1]
        %v303 = vld [vmem:[%s122 + $0x42] sm:$0x1]
        %v304 = vld [vmem:[%s122 + $0x4a] sm:$0x1]
        %v305 = vld [vmem:[%s122 + $0x52] sm:$0x1]
        %v306 = vld [vmem:[%s122 + $0x5a] sm:$0x1]
        %v307 = vld [vmem:[%s122 + $0x62] sm:$0x1]
        %v308 = vld [vmem:[%s122 + $0x6a] sm:$0x1]
        %v309 = vld [vmem:[%s122 + $0x72] sm:$0x1]
        %v310 = vld [vmem:[%s122 + $0x7a] sm:$0x1]
        %v311 = vld [vmem:[%s122 + $0x82] sm:$0x1]
        %v312 = vld [vmem:[%s122 + $0x8a] sm:$0x1]
        %v313 = vld [vmem:[%s122 + $0x92] sm:$0x1]
        %v314 = vld [vmem:[%s122 + $0x9a] sm:$0x1]
        %v315 = vld [vmem:[%s122 + $0xa2] sm:$0x1]
        %v316 = vld [vmem:[%s122 + $0xaa] sm:$0x1]
        %v317 = vld [vmem:[%s122 + $0xb2] sm:$0x1]
        %v318 = vld [vmem:[%s122 + $0xba] sm:$0x1]
        %v319 = vadd.f32 %v223, %v295
        %v320 = vadd.f32 %v224, %v296
        %v321 = vadd.f32 %v225, %v297
        %v322 = vadd.f32 %v226, %v298
        %v323 = vadd.f32 %v227, %v299
        %v324 = vadd.f32 %v228, %v300
        %v325 = vadd.f32 %v229, %v301
        %v326 = vadd.f32 %v230, %v302
        %v327 = vadd.f32 %v231, %v303
        %v328 = vadd.f32 %v232, %v304
        %v329 = vadd.f32 %v233, %v305
        %v330 = vadd.f32 %v234, %v306
        %v331 = vadd.f32 %v235, %v307
        %v332 = vadd.f32 %v236, %v308
        %v333 = vadd.f32 %v237, %v309
        %v334 = vadd.f32 %v238, %v310
        %v335 = vadd.f32 %v239, %v311
        %v336 = vadd.f32 %v240, %v312
        %v337 = vadd.f32 %v241, %v313
        %v338 = vadd.f32 %v242, %v314
        %v339 = vadd.f32 %v243, %v315
        %v340 = vadd.f32 %v244, %v316
        %v341 = vadd.f32 %v245, %v317
        %v342 = vadd.f32 %v246, %v318
        %v343 = vmul.f32 %v295, %v295
        %v344 = vmul.f32 %v296, %v296
        %v345 = vmul.f32 %v297, %v297
        %v346 = vmul.f32 %v298, %v298
        %v347 = vmul.f32 %v299, %v299
        %v348 = vmul.f32 %v300, %v300
        %v349 = vmul.f32 %v301, %v301
        %v350 = vmul.f32 %v302, %v302
        %v351 = vmul.f32 %v303, %v303
        %v352 = vmul.f32 %v304, %v304
        %v353 = vmul.f32 %v305, %v305
        %v354 = vmul.f32 %v306, %v306
        %v355 = vmul.f32 %v307, %v307
        %v356 = vmul.f32 %v308, %v308
        %v357 = vmul.f32 %v309, %v309
        %v358 = vmul.f32 %v310, %v310
        %v359 = vmul.f32 %v311, %v311
        %v360 = vmul.f32 %v312, %v312
        %v361 = vmul.f32 %v313, %v313
        %v362 = vmul.f32 %v314, %v314
        %v363 = vmul.f32 %v315, %v315
        %v364 = vmul.f32 %v316, %v316
        %v365 = vmul.f32 %v317, %v317
        %v366 = vmul.f32 %v318, %v318
        %v367 = vadd.f32 %v271, %v343
        %v368 = vadd.f32 %v272, %v344
        %v369 = vadd.f32 %v273, %v345
        %v370 = vadd.f32 %v274, %v346
        %v371 = vadd.f32 %v275, %v347
        %v372 = vadd.f32 %v276, %v348
        %v373 = vadd.f32 %v277, %v349
        %v374 = vadd.f32 %v278, %v350
        %v375 = vadd.f32 %v279, %v351
        %v376 = vadd.f32 %v280, %v352
        %v377 = vadd.f32 %v281, %v353
        %v378 = vadd.f32 %v282, %v354
        %v379 = vadd.f32 %v283, %v355
        %v380 = vadd.f32 %v284, %v356
        %v381 = vadd.f32 %v285, %v357
        %v382 = vadd.f32 %v286, %v358
        %v383 = vadd.f32 %v287, %v359
        %v384 = vadd.f32 %v288, %v360
        %v385 = vadd.f32 %v289, %v361
        %v386 = vadd.f32 %v290, %v362
        %v387 = vadd.f32 %v291, %v363
        %v388 = vadd.f32 %v292, %v364
        %v389 = vadd.f32 %v293, %v365
        %v390 = vadd.f32 %v294, %v366
        %v391 = vld [vmem:[%s122 + $0x3] sm:$0x1]
        %v392 = vld [vmem:[%s122 + $0xb] sm:$0x1]
        %v393 = vld [vmem:[%s122 + $0x13] sm:$0x1]
        %v394 = vld [vmem:[%s122 + $0x1b] sm:$0x1]
        %v395 = vld [vmem:[%s122 + $0x23] sm:$0x1]
        %v396 = vld [vmem:[%s122 + $0x2b] sm:$0x1]
        %v397 = vld [vmem:[%s122 + $0x33] sm:$0x1]
        %v398 = vld [vmem:[%s122 + $0x3b] sm:$0x1]
        %v399 = vld [vmem:[%s122 + $0x43] sm:$0x1]
        %v400 = vld [vmem:[%s122 + $0x4b] sm:$0x1]
        %v401 = vld [vmem:[%s122 + $0x53] sm:$0x1]
        %v402 = vld [vmem:[%s122 + $0x5b] sm:$0x1]
        %v403 = vld [vmem:[%s122 + $0x63] sm:$0x1]
        %v404 = vld [vmem:[%s122 + $0x6b] sm:$0x1]
        %v405 = vld [vmem:[%s122 + $0x73] sm:$0x1]
        %v406 = vld [vmem:[%s122 + $0x7b] sm:$0x1]
        %v407 = vld [vmem:[%s122 + $0x83] sm:$0x1]
        %v408 = vld [vmem:[%s122 + $0x8b] sm:$0x1]
        %v409 = vld [vmem:[%s122 + $0x93] sm:$0x1]
        %v410 = vld [vmem:[%s122 + $0x9b] sm:$0x1]
        %v411 = vld [vmem:[%s122 + $0xa3] sm:$0x1]
        %v412 = vld [vmem:[%s122 + $0xab] sm:$0x1]
        %v413 = vld [vmem:[%s122 + $0xb3] sm:$0x1]
        %v414 = vld [vmem:[%s122 + $0xbb] sm:$0x1]
        %v415 = vadd.f32 %v319, %v391
        %v416 = vadd.f32 %v320, %v392
        %v417 = vadd.f32 %v321, %v393
        %v418 = vadd.f32 %v322, %v394
        %v419 = vadd.f32 %v323, %v395
        %v420 = vadd.f32 %v324, %v396
        %v421 = vadd.f32 %v325, %v397
        %v422 = vadd.f32 %v326, %v398
        %v423 = vadd.f32 %v327, %v399
        %v424 = vadd.f32 %v328, %v400
        %v425 = vadd.f32 %v329, %v401
        %v426 = vadd.f32 %v330, %v402
        %v427 = vadd.f32 %v331, %v403
        %v428 = vadd.f32 %v332, %v404
        %v429 = vadd.f32 %v333, %v405
        %v430 = vadd.f32 %v334, %v406
        %v431 = vadd.f32 %v335, %v407
        %v432 = vadd.f32 %v336, %v408
        %v433 = vadd.f32 %v337, %v409
        %v434 = vadd.f32 %v338, %v410
        %v435 = vadd.f32 %v339, %v411
        %v436 = vadd.f32 %v340, %v412
        %v437 = vadd.f32 %v341, %v413
        %v438 = vadd.f32 %v342, %v414
        %v439 = vmul.f32 %v391, %v391
        %v440 = vmul.f32 %v392, %v392
        %v441 = vmul.f32 %v393, %v393
        %v442 = vmul.f32 %v394, %v394
        %v443 = vmul.f32 %v395, %v395
        %v444 = vmul.f32 %v396, %v396
        %v445 = vmul.f32 %v397, %v397
        %v446 = vmul.f32 %v398, %v398
        %v447 = vmul.f32 %v399, %v399
        %v448 = vmul.f32 %v400, %v400
        %v449 = vmul.f32 %v401, %v401
        %v450 = vmul.f32 %v402, %v402
        %v451 = vmul.f32 %v403, %v403
        %v452 = vmul.f32 %v404, %v404
        %v453 = vmul.f32 %v405, %v405
        %v454 = vmul.f32 %v406, %v406
        %v455 = vmul.f32 %v407, %v407
        %v456 = vmul.f32 %v408, %v408
        %v457 = vmul.f32 %v409, %v409
        %v458 = vmul.f32 %v410, %v410
        %v459 = vmul.f32 %v411, %v411
        %v460 = vmul.f32 %v412, %v412
        %v461 = vmul.f32 %v413, %v413
        %v462 = vmul.f32 %v414, %v414
        %v463 = vadd.f32 %v367, %v439
        %v464 = vadd.f32 %v368, %v440
        %v465 = vadd.f32 %v369, %v441
        %v466 = vadd.f32 %v370, %v442
        %v467 = vadd.f32 %v371, %v443
        %v468 = vadd.f32 %v372, %v444
        %v469 = vadd.f32 %v373, %v445
        %v470 = vadd.f32 %v374, %v446
        %v471 = vadd.f32 %v375, %v447
        %v472 = vadd.f32 %v376, %v448
        %v473 = vadd.f32 %v377, %v449
        %v474 = vadd.f32 %v378, %v450
        %v475 = vadd.f32 %v379, %v451
        %v476 = vadd.f32 %v380, %v452
        %v477 = vadd.f32 %v381, %v453
        %v478 = vadd.f32 %v382, %v454
        %v479 = vadd.f32 %v383, %v455
        %v480 = vadd.f32 %v384, %v456
        %v481 = vadd.f32 %v385, %v457
        %v482 = vadd.f32 %v386, %v458
        %v483 = vadd.f32 %v387, %v459
        %v484 = vadd.f32 %v388, %v460
        %v485 = vadd.f32 %v389, %v461
        %v486 = vadd.f32 %v390, %v462
        %v487 = vld [vmem:[%s122 + $0x4] sm:$0x1]
        %v488 = vld [vmem:[%s122 + $0xc] sm:$0x1]
        %v489 = vld [vmem:[%s122 + $0x14] sm:$0x1]
        %v490 = vld [vmem:[%s122 + $0x1c] sm:$0x1]
        %v491 = vld [vmem:[%s122 + $0x24] sm:$0x1]
        %v492 = vld [vmem:[%s122 + $0x2c] sm:$0x1]
        %v493 = vld [vmem:[%s122 + $0x34] sm:$0x1]
        %v494 = vld [vmem:[%s122 + $0x3c] sm:$0x1]
        %v495 = vld [vmem:[%s122 + $0x44] sm:$0x1]
        %v496 = vld [vmem:[%s122 + $0x4c] sm:$0x1]
        %v497 = vld [vmem:[%s122 + $0x54] sm:$0x1]
        %v498 = vld [vmem:[%s122 + $0x5c] sm:$0x1]
        %v499 = vld [vmem:[%s122 + $0x64] sm:$0x1]
        %v500 = vld [vmem:[%s122 + $0x6c] sm:$0x1]
        %v501 = vld [vmem:[%s122 + $0x74] sm:$0x1]
        %v502 = vld [vmem:[%s122 + $0x7c] sm:$0x1]
        %v503 = vld [vmem:[%s122 + $0x84] sm:$0x1]
        %v504 = vld [vmem:[%s122 + $0x8c] sm:$0x1]
        %v505 = vld [vmem:[%s122 + $0x94] sm:$0x1]
        %v506 = vld [vmem:[%s122 + $0x9c] sm:$0x1]
        %v507 = vld [vmem:[%s122 + $0xa4] sm:$0x1]
        %v508 = vld [vmem:[%s122 + $0xac] sm:$0x1]
        %v509 = vld [vmem:[%s122 + $0xb4] sm:$0x1]
        %v510 = vld [vmem:[%s122 + $0xbc] sm:$0x1]
        %v511 = vadd.f32 %v415, %v487
        %v512 = vadd.f32 %v416, %v488
        %v513 = vadd.f32 %v417, %v489
        %v514 = vadd.f32 %v418, %v490
        %v515 = vadd.f32 %v419, %v491
        %v516 = vadd.f32 %v420, %v492
        %v517 = vadd.f32 %v421, %v493
        %v518 = vadd.f32 %v422, %v494
        %v519 = vadd.f32 %v423, %v495
        %v520 = vadd.f32 %v424, %v496
        %v521 = vadd.f32 %v425, %v497
        %v522 = vadd.f32 %v426, %v498
        %v523 = vadd.f32 %v427, %v499
        %v524 = vadd.f32 %v428, %v500
        %v525 = vadd.f32 %v429, %v501
        %v526 = vadd.f32 %v430, %v502
        %v527 = vadd.f32 %v431, %v503
        %v528 = vadd.f32 %v432, %v504
        %v529 = vadd.f32 %v433, %v505
        %v530 = vadd.f32 %v434, %v506
        %v531 = vadd.f32 %v435, %v507
        %v532 = vadd.f32 %v436, %v508
        %v533 = vadd.f32 %v437, %v509
        %v534 = vadd.f32 %v438, %v510
        %v535 = vmul.f32 %v487, %v487
        %v536 = vmul.f32 %v488, %v488
        %v537 = vmul.f32 %v489, %v489
        %v538 = vmul.f32 %v490, %v490
        %v539 = vmul.f32 %v491, %v491
        %v540 = vmul.f32 %v492, %v492
        %v541 = vmul.f32 %v493, %v493
        %v542 = vmul.f32 %v494, %v494
        %v543 = vmul.f32 %v495, %v495
        %v544 = vmul.f32 %v496, %v496
        %v545 = vmul.f32 %v497, %v497
        %v546 = vmul.f32 %v498, %v498
        %v547 = vmul.f32 %v499, %v499
        %v548 = vmul.f32 %v500, %v500
        %v549 = vmul.f32 %v501, %v501
        %v550 = vmul.f32 %v502, %v502
        %v551 = vmul.f32 %v503, %v503
        %v552 = vmul.f32 %v504, %v504
        %v553 = vmul.f32 %v505, %v505
        %v554 = vmul.f32 %v506, %v506
        %v555 = vmul.f32 %v507, %v507
        %v556 = vmul.f32 %v508, %v508
        %v557 = vmul.f32 %v509, %v509
        %v558 = vmul.f32 %v510, %v510
        %v559 = vadd.f32 %v463, %v535
        %v560 = vadd.f32 %v464, %v536
        %v561 = vadd.f32 %v465, %v537
        %v562 = vadd.f32 %v466, %v538
        %v563 = vadd.f32 %v467, %v539
        %v564 = vadd.f32 %v468, %v540
        %v565 = vadd.f32 %v469, %v541
        %v566 = vadd.f32 %v470, %v542
        %v567 = vadd.f32 %v471, %v543
        %v568 = vadd.f32 %v472, %v544
        %v569 = vadd.f32 %v473, %v545
        %v570 = vadd.f32 %v474, %v546
        %v571 = vadd.f32 %v475, %v547
        %v572 = vadd.f32 %v476, %v548
        %v573 = vadd.f32 %v477, %v549
        %v574 = vadd.f32 %v478, %v550
        %v575 = vadd.f32 %v479, %v551
        %v576 = vadd.f32 %v480, %v552
        %v577 = vadd.f32 %v481, %v553
        %v578 = vadd.f32 %v482, %v554
        %v579 = vadd.f32 %v483, %v555
        %v580 = vadd.f32 %v484, %v556
        %v581 = vadd.f32 %v485, %v557
        %v582 = vadd.f32 %v486, %v558
        %v583 = vld [vmem:[%s122 + $0x5] sm:$0x1]
        %v584 = vld [vmem:[%s122 + $0xd] sm:$0x1]
        %v585 = vld [vmem:[%s122 + $0x15] sm:$0x1]
        %v586 = vld [vmem:[%s122 + $0x1d] sm:$0x1]
        %v587 = vld [vmem:[%s122 + $0x25] sm:$0x1]
        %v588 = vld [vmem:[%s122 + $0x2d] sm:$0x1]
        %v589 = vld [vmem:[%s122 + $0x35] sm:$0x1]
        %v590 = vld [vmem:[%s122 + $0x3d] sm:$0x1]
        %v591 = vld [vmem:[%s122 + $0x45] sm:$0x1]
        %v592 = vld [vmem:[%s122 + $0x4d] sm:$0x1]
        %v593 = vld [vmem:[%s122 + $0x55] sm:$0x1]
        %v594 = vld [vmem:[%s122 + $0x5d] sm:$0x1]
        %v595 = vld [vmem:[%s122 + $0x65] sm:$0x1]
        %v596 = vld [vmem:[%s122 + $0x6d] sm:$0x1]
        %v597 = vld [vmem:[%s122 + $0x75] sm:$0x1]
        %v598 = vld [vmem:[%s122 + $0x7d] sm:$0x1]
        %v599 = vld [vmem:[%s122 + $0x85] sm:$0x1]
        %v600 = vld [vmem:[%s122 + $0x8d] sm:$0x1]
        %v601 = vld [vmem:[%s122 + $0x95] sm:$0x1]
        %v602 = vld [vmem:[%s122 + $0x9d] sm:$0x1]
        %v603 = vld [vmem:[%s122 + $0xa5] sm:$0x1]
        %v604 = vld [vmem:[%s122 + $0xad] sm:$0x1]
        %v605 = vld [vmem:[%s122 + $0xb5] sm:$0x1]
        %v606 = vld [vmem:[%s122 + $0xbd] sm:$0x1]
        %v607 = vadd.f32 %v511, %v583
        %v608 = vadd.f32 %v512, %v584
        %v609 = vadd.f32 %v513, %v585
        %v610 = vadd.f32 %v514, %v586
        %v611 = vadd.f32 %v515, %v587
        %v612 = vadd.f32 %v516, %v588
        %v613 = vadd.f32 %v517, %v589
        %v614 = vadd.f32 %v518, %v590
        %v615 = vadd.f32 %v519, %v591
        %v616 = vadd.f32 %v520, %v592
        %v617 = vadd.f32 %v521, %v593
        %v618 = vadd.f32 %v522, %v594
        %v619 = vadd.f32 %v523, %v595
        %v620 = vadd.f32 %v524, %v596
        %v621 = vadd.f32 %v525, %v597
        %v622 = vadd.f32 %v526, %v598
        %v623 = vadd.f32 %v527, %v599
        %v624 = vadd.f32 %v528, %v600
        %v625 = vadd.f32 %v529, %v601
        %v626 = vadd.f32 %v530, %v602
        %v627 = vadd.f32 %v531, %v603
        %v628 = vadd.f32 %v532, %v604
        %v629 = vadd.f32 %v533, %v605
        %v630 = vadd.f32 %v534, %v606
        %v631 = vmul.f32 %v583, %v583
        %v632 = vmul.f32 %v584, %v584
        %v633 = vmul.f32 %v585, %v585
        %v634 = vmul.f32 %v586, %v586
        %v635 = vmul.f32 %v587, %v587
        %v636 = vmul.f32 %v588, %v588
        %v637 = vmul.f32 %v589, %v589
        %v638 = vmul.f32 %v590, %v590
        %v639 = vmul.f32 %v591, %v591
        %v640 = vmul.f32 %v592, %v592
        %v641 = vmul.f32 %v593, %v593
        %v642 = vmul.f32 %v594, %v594
        %v643 = vmul.f32 %v595, %v595
        %v644 = vmul.f32 %v596, %v596
        %v645 = vmul.f32 %v597, %v597
        %v646 = vmul.f32 %v598, %v598
        %v647 = vmul.f32 %v599, %v599
        %v648 = vmul.f32 %v600, %v600
        %v649 = vmul.f32 %v601, %v601
        %v650 = vmul.f32 %v602, %v602
        %v651 = vmul.f32 %v603, %v603
        %v652 = vmul.f32 %v604, %v604
        %v653 = vmul.f32 %v605, %v605
        %v654 = vmul.f32 %v606, %v606
        %v655 = vadd.f32 %v559, %v631
        %v656 = vadd.f32 %v560, %v632
        %v657 = vadd.f32 %v561, %v633
        %v658 = vadd.f32 %v562, %v634
        %v659 = vadd.f32 %v563, %v635
        %v660 = vadd.f32 %v564, %v636
        %v661 = vadd.f32 %v565, %v637
        %v662 = vadd.f32 %v566, %v638
        %v663 = vadd.f32 %v567, %v639
        %v664 = vadd.f32 %v568, %v640
        %v665 = vadd.f32 %v569, %v641
        %v666 = vadd.f32 %v570, %v642
        %v667 = vadd.f32 %v571, %v643
        %v668 = vadd.f32 %v572, %v644
        %v669 = vadd.f32 %v573, %v645
        %v670 = vadd.f32 %v574, %v646
        %v671 = vadd.f32 %v575, %v647
        %v672 = vadd.f32 %v576, %v648
        %v673 = vadd.f32 %v577, %v649
        %v674 = vadd.f32 %v578, %v650
        %v675 = vadd.f32 %v579, %v651
        %v676 = vadd.f32 %v580, %v652
        %v677 = vadd.f32 %v581, %v653
        %v678 = vadd.f32 %v582, %v654
        %v679 = vld [vmem:[%s122 + $0x6] sm:$0x1]
        %v680 = vld [vmem:[%s122 + $0xe] sm:$0x1]
        %v681 = vld [vmem:[%s122 + $0x16] sm:$0x1]
        %v682 = vld [vmem:[%s122 + $0x1e] sm:$0x1]
        %v683 = vld [vmem:[%s122 + $0x26] sm:$0x1]
        %v684 = vld [vmem:[%s122 + $0x2e] sm:$0x1]
        %v685 = vld [vmem:[%s122 + $0x36] sm:$0x1]
        %v686 = vld [vmem:[%s122 + $0x3e] sm:$0x1]
        %v687 = vld [vmem:[%s122 + $0x46] sm:$0x1]
        %v688 = vld [vmem:[%s122 + $0x4e] sm:$0x1]
        %v689 = vld [vmem:[%s122 + $0x56] sm:$0x1]
        %v690 = vld [vmem:[%s122 + $0x5e] sm:$0x1]
        %v691 = vld [vmem:[%s122 + $0x66] sm:$0x1]
        %v692 = vld [vmem:[%s122 + $0x6e] sm:$0x1]
        %v693 = vld [vmem:[%s122 + $0x76] sm:$0x1]
        %v694 = vld [vmem:[%s122 + $0x7e] sm:$0x1]
        %v695 = vld [vmem:[%s122 + $0x86] sm:$0x1]
        %v696 = vld [vmem:[%s122 + $0x8e] sm:$0x1]
        %v697 = vld [vmem:[%s122 + $0x96] sm:$0x1]
        %v698 = vld [vmem:[%s122 + $0x9e] sm:$0x1]
        %v699 = vld [vmem:[%s122 + $0xa6] sm:$0x1]
        %v700 = vld [vmem:[%s122 + $0xae] sm:$0x1]
        %v701 = vld [vmem:[%s122 + $0xb6] sm:$0x1]
        %v702 = vld [vmem:[%s122 + $0xbe] sm:$0x1]
        %v703 = vadd.f32 %v607, %v679
        %v704 = vadd.f32 %v608, %v680
        %v705 = vadd.f32 %v609, %v681
        %v706 = vadd.f32 %v610, %v682
        %v707 = vadd.f32 %v611, %v683
        %v708 = vadd.f32 %v612, %v684
        %v709 = vadd.f32 %v613, %v685
        %v710 = vadd.f32 %v614, %v686
        %v711 = vadd.f32 %v615, %v687
        %v712 = vadd.f32 %v616, %v688
        %v713 = vadd.f32 %v617, %v689
        %v714 = vadd.f32 %v618, %v690
        %v715 = vadd.f32 %v619, %v691
        %v716 = vadd.f32 %v620, %v692
        %v717 = vadd.f32 %v621, %v693
        %v718 = vadd.f32 %v622, %v694
        %v719 = vadd.f32 %v623, %v695
        %v720 = vadd.f32 %v624, %v696
        %v721 = vadd.f32 %v625, %v697
        %v722 = vadd.f32 %v626, %v698
        %v723 = vadd.f32 %v627, %v699
        %v724 = vadd.f32 %v628, %v700
        %v725 = vadd.f32 %v629, %v701
        %v726 = vadd.f32 %v630, %v702
        %v727 = vmul.f32 %v679, %v679
        %v728 = vmul.f32 %v680, %v680
        %v729 = vmul.f32 %v681, %v681
        %v730 = vmul.f32 %v682, %v682
        %v731 = vmul.f32 %v683, %v683
        %v732 = vmul.f32 %v684, %v684
        %v733 = vmul.f32 %v685, %v685
        %v734 = vmul.f32 %v686, %v686
        %v735 = vmul.f32 %v687, %v687
        %v736 = vmul.f32 %v688, %v688
        %v737 = vmul.f32 %v689, %v689
        %v738 = vmul.f32 %v690, %v690
        %v739 = vmul.f32 %v691, %v691
        %v740 = vmul.f32 %v692, %v692
        %v741 = vmul.f32 %v693, %v693
        %v742 = vmul.f32 %v694, %v694
        %v743 = vmul.f32 %v695, %v695
        %v744 = vmul.f32 %v696, %v696
        %v745 = vmul.f32 %v697, %v697
        %v746 = vmul.f32 %v698, %v698
        %v747 = vmul.f32 %v699, %v699
        %v748 = vmul.f32 %v700, %v700
        %v749 = vmul.f32 %v701, %v701
        %v750 = vmul.f32 %v702, %v702
        %v751 = vadd.f32 %v655, %v727
        %v752 = vadd.f32 %v656, %v728
        %v753 = vadd.f32 %v657, %v729
        %v754 = vadd.f32 %v658, %v730
        %v755 = vadd.f32 %v659, %v731
        %v756 = vadd.f32 %v660, %v732
        %v757 = vadd.f32 %v661, %v733
        %v758 = vadd.f32 %v662, %v734
        %v759 = vadd.f32 %v663, %v735
        %v760 = vadd.f32 %v664, %v736
        %v761 = vadd.f32 %v665, %v737
        %v762 = vadd.f32 %v666, %v738
        %v763 = vadd.f32 %v667, %v739
        %v764 = vadd.f32 %v668, %v740
        %v765 = vadd.f32 %v669, %v741
        %v766 = vadd.f32 %v670, %v742
        %v767 = vadd.f32 %v671, %v743
        %v768 = vadd.f32 %v672, %v744
        %v769 = vadd.f32 %v673, %v745
        %v770 = vadd.f32 %v674, %v746
        %v771 = vadd.f32 %v675, %v747
        %v772 = vadd.f32 %v676, %v748
        %v773 = vadd.f32 %v677, %v749
        %v774 = vadd.f32 %v678, %v750
        %v775 = vld [vmem:[%s122 + $0x7] sm:$0x1]
        %v776 = vld [vmem:[%s122 + $0xf] sm:$0x1]
        %v777 = vld [vmem:[%s122 + $0x17] sm:$0x1]
        %v778 = vld [vmem:[%s122 + $0x1f] sm:$0x1]
        %v779 = vld [vmem:[%s122 + $0x27] sm:$0x1]
        %v780 = vld [vmem:[%s122 + $0x2f] sm:$0x1]
        %v781 = vld [vmem:[%s122 + $0x37] sm:$0x1]
        %v782 = vld [vmem:[%s122 + $0x3f] sm:$0x1]
        %v783 = vld [vmem:[%s122 + $0x47] sm:$0x1]
        %v784 = vld [vmem:[%s122 + $0x4f] sm:$0x1]
        %v785 = vld [vmem:[%s122 + $0x57] sm:$0x1]
        %v786 = vld [vmem:[%s122 + $0x5f] sm:$0x1]
        %v787 = vld [vmem:[%s122 + $0x67] sm:$0x1]
        %v788 = vld [vmem:[%s122 + $0x6f] sm:$0x1]
        %v789 = vld [vmem:[%s122 + $0x77] sm:$0x1]
        %v790 = vld [vmem:[%s122 + $0x7f] sm:$0x1]
        %v791 = vld [vmem:[%s122 + $0x87] sm:$0x1]
        %v792 = vld [vmem:[%s122 + $0x8f] sm:$0x1]
        %v793 = vld [vmem:[%s122 + $0x97] sm:$0x1]
        %v794 = vld [vmem:[%s122 + $0x9f] sm:$0x1]
        %v795 = vld [vmem:[%s122 + $0xa7] sm:$0x1]
        %v796 = vld [vmem:[%s122 + $0xaf] sm:$0x1]
        %v797 = vld [vmem:[%s122 + $0xb7] sm:$0x1]
        %v798 = vld [vmem:[%s122 + $0xbf] sm:$0x1]
        %v799 = vadd.f32 %v703, %v775
        %v800 = vadd.f32 %v704, %v776
        %v801 = vadd.f32 %v705, %v777
        %v802 = vadd.f32 %v706, %v778
        %v803 = vadd.f32 %v707, %v779
        %v804 = vadd.f32 %v708, %v780
        %v805 = vadd.f32 %v709, %v781
        %v806 = vadd.f32 %v710, %v782
        %v807 = vadd.f32 %v711, %v783
        %v808 = vadd.f32 %v712, %v784
        %v809 = vadd.f32 %v713, %v785
        %v810 = vadd.f32 %v714, %v786
        %v811 = vadd.f32 %v715, %v787
        %v812 = vadd.f32 %v716, %v788
        %v813 = vadd.f32 %v717, %v789
        %v814 = vadd.f32 %v718, %v790
        %v815 = vadd.f32 %v719, %v791
        %v816 = vadd.f32 %v720, %v792
        %v817 = vadd.f32 %v721, %v793
        %v818 = vadd.f32 %v722, %v794
        %v819 = vadd.f32 %v723, %v795
        %v820 = vadd.f32 %v724, %v796
        %v821 = vadd.f32 %v725, %v797
        %v822 = vadd.f32 %v726, %v798
        %v823 = vmul.f32 %v775, %v775
        %v824 = vmul.f32 %v776, %v776
        %v825 = vmul.f32 %v777, %v777
        %v826 = vmul.f32 %v778, %v778
        %v827 = vmul.f32 %v779, %v779
        %v828 = vmul.f32 %v780, %v780
        %v829 = vmul.f32 %v781, %v781
        %v830 = vmul.f32 %v782, %v782
        %v831 = vmul.f32 %v783, %v783
        %v832 = vmul.f32 %v784, %v784
        %v833 = vmul.f32 %v785, %v785
        %v834 = vmul.f32 %v786, %v786
        %v835 = vmul.f32 %v787, %v787
        %v836 = vmul.f32 %v788, %v788
        %v837 = vmul.f32 %v789, %v789
        %v838 = vmul.f32 %v790, %v790
        %v839 = vmul.f32 %v791, %v791
        %v840 = vmul.f32 %v792, %v792
        %v841 = vmul.f32 %v793, %v793
        %v842 = vmul.f32 %v794, %v794
        %v843 = vmul.f32 %v795, %v795
        %v844 = vmul.f32 %v796, %v796
        %v845 = vmul.f32 %v797, %v797
        %v846 = vmul.f32 %v798, %v798
        %v847 = vadd.f32 %v751, %v823
        %v848 = vadd.f32 %v752, %v824
        %v849 = vadd.f32 %v753, %v825
        %v850 = vadd.f32 %v754, %v826
        %v851 = vadd.f32 %v755, %v827
        %v852 = vadd.f32 %v756, %v828
        %v853 = vadd.f32 %v757, %v829
        %v854 = vadd.f32 %v758, %v830
        %v855 = vadd.f32 %v759, %v831
        %v856 = vadd.f32 %v760, %v832
        %v857 = vadd.f32 %v761, %v833
        %v858 = vadd.f32 %v762, %v834
        %v859 = vadd.f32 %v763, %v835
        %v860 = vadd.f32 %v764, %v836
        %v861 = vadd.f32 %v765, %v837
        %v862 = vadd.f32 %v766, %v838
        %v863 = vadd.f32 %v767, %v839
        %v864 = vadd.f32 %v768, %v840
        %v865 = vadd.f32 %v769, %v841
        %v866 = vadd.f32 %v770, %v842
        %v867 = vadd.f32 %v771, %v843
        %v868 = vadd.f32 %v772, %v844
        %v869 = vadd.f32 %v773, %v845
        %v870 = vadd.f32 %v774, %v846
        %v871 = vmul.f32 %v799, %v799
        %v872 = vmul.f32 %v800, %v800
        %v873 = vmul.f32 %v801, %v801
        %v874 = vmul.f32 %v802, %v802
        %v875 = vmul.f32 %v803, %v803
        %v876 = vmul.f32 %v804, %v804
        %v877 = vmul.f32 %v805, %v805
        %v878 = vmul.f32 %v806, %v806
        %v879 = vmul.f32 %v807, %v807
        %v880 = vmul.f32 %v808, %v808
        %v881 = vmul.f32 %v809, %v809
        %v882 = vmul.f32 %v810, %v810
        %v883 = vmul.f32 %v811, %v811
        %v884 = vmul.f32 %v812, %v812
        %v885 = vmul.f32 %v813, %v813
        %v886 = vmul.f32 %v814, %v814
        %v887 = vmul.f32 %v815, %v815
        %v888 = vmul.f32 %v816, %v816
        %v889 = vmul.f32 %v817, %v817
        %v890 = vmul.f32 %v818, %v818
        %v891 = vmul.f32 %v819, %v819
        %v892 = vmul.f32 %v820, %v820
        %v893 = vmul.f32 %v821, %v821
        %v894 = vmul.f32 %v822, %v822
        %v895 = vsub.f32 %v871, %v847
        %v896 = vsub.f32 %v872, %v848
        %v897 = vsub.f32 %v873, %v849
        %v898 = vsub.f32 %v874, %v850
        %v899 = vsub.f32 %v875, %v851
        %v900 = vsub.f32 %v876, %v852
        %v901 = vsub.f32 %v877, %v853
        %v902 = vsub.f32 %v878, %v854
        %v903 = vsub.f32 %v879, %v855
        %v904 = vsub.f32 %v880, %v856
        %v905 = vsub.f32 %v881, %v857
        %v906 = vsub.f32 %v882, %v858
        %v907 = vsub.f32 %v883, %v859
        %v908 = vsub.f32 %v884, %v860
        %v909 = vsub.f32 %v885, %v861
        %v910 = vsub.f32 %v886, %v862
        %v911 = vsub.f32 %v887, %v863
        %v912 = vsub.f32 %v888, %v864
        %v913 = vsub.f32 %v889, %v865
        %v914 = vsub.f32 %v890, %v866
        %v915 = vsub.f32 %v891, %v867
        %v916 = vsub.f32 %v892, %v868
        %v917 = vsub.f32 %v893, %v869
        %v918 = vsub.f32 %v894, %v870
        %v919 = vmul.f32 %v895, 0.5
        %v920 = vmul.f32 %v896, 0.5
        %v921 = vmul.f32 %v897, 0.5
        %v922 = vmul.f32 %v898, 0.5
        %v923 = vmul.f32 %v899, 0.5
        %v924 = vmul.f32 %v900, 0.5
        %v925 = vmul.f32 %v901, 0.5
        %v926 = vmul.f32 %v902, 0.5
        %v927 = vmul.f32 %v903, 0.5
        %v928 = vmul.f32 %v904, 0.5
        %v929 = vmul.f32 %v905, 0.5
        %v930 = vmul.f32 %v906, 0.5
        %v931 = vmul.f32 %v907, 0.5
        %v932 = vmul.f32 %v908, 0.5
        %v933 = vmul.f32 %v909, 0.5
        %v934 = vmul.f32 %v910, 0.5
        %v935 = vmul.f32 %v911, 0.5
        %v936 = vmul.f32 %v912, 0.5
        %v937 = vmul.f32 %v913, 0.5
        %v938 = vmul.f32 %v914, 0.5
        %v939 = vmul.f32 %v915, 0.5
        %v940 = vmul.f32 %v916, 0.5
        %v941 = vmul.f32 %v917, 0.5
        %v942 = vmul.f32 %v918, 0.5
        %v967 = vrot.slane %v920, 7
        %vm968 = vcmask 1041409
        %v969 = vsel %vm968, %v967, %v919
        %v970 = vrot.slane %v921, 6
        %vm971 = vcmask 1042434
        %v972 = vsel %vm971, %v970, %v969
        %v973 = vrot.slane %v922, 5
        %vm974 = vcmask 1043459
        %v975 = vsel %vm974, %v973, %v972
        %v976 = vrot.slane %v923, 4
        %vm977 = vcmask 1044484
        %v978 = vsel %vm977, %v976, %v975
        %v979 = vrot.slane %v924, 3
        %vm980 = vcmask 1045509
        %v981 = vsel %vm980, %v979, %v978
        %v982 = vrot.slane %v925, 2
        %vm983 = vcmask 1046534
        %v984 = vsel %vm983, %v982, %v981
        %v985 = vrot.slane %v926, 1
        %vm986 = vcmask 1047559
        %v987 = vsel %vm986, %v985, %v984
        %v988 = vrot.slane %v928, 7
        %v989 = vsel %vm968, %v988, %v927
        %v990 = vrot.slane %v929, 6
        %v991 = vsel %vm971, %v990, %v989
        %v992 = vrot.slane %v930, 5
        %v993 = vsel %vm974, %v992, %v991
        %v994 = vrot.slane %v931, 4
        %v995 = vsel %vm977, %v994, %v993
        %v996 = vrot.slane %v932, 3
        %v997 = vsel %vm980, %v996, %v995
        %v998 = vrot.slane %v933, 2
        %v999 = vsel %vm983, %v998, %v997
        %v1000 = vrot.slane %v934, 1
        %v1001 = vsel %vm986, %v1000, %v999
        %v1002 = vrot.slane %v936, 7
        %v1003 = vsel %vm968, %v1002, %v935
        %v1004 = vrot.slane %v937, 6
        %v1005 = vsel %vm971, %v1004, %v1003
        %v1006 = vrot.slane %v938, 5
        %v1007 = vsel %vm974, %v1006, %v1005
        %v1008 = vrot.slane %v939, 4
        %v1009 = vsel %vm977, %v1008, %v1007
        %v1010 = vrot.slane %v940, 3
        %v1011 = vsel %vm980, %v1010, %v1009
        %v1012 = vrot.slane %v941, 2
        %v1013 = vsel %vm983, %v1012, %v1011
        %v1014 = vrot.slane %v942, 1
        %v1015 = vsel %vm986, %v1014, %v1013
        %1019 = vst [vmem:[%s140] sm:$0xff] %v987
        %1020 = vst [vmem:[%s140 + $0x8] sm:$0xff] %v1001
        %1021 = vst [vmem:[%s140 + $0x10] sm:$0xff] %v1015
        %s1022 = sand.u32 %s52, 1
        %s1023 = scalar_lea.sflag [#allocation4], %s1022
        %s1024 = sand.u32 %s52, 1
        %s1025 = smul.addr %s1024, 24
        %s1026 = scalar_lea.vmem [#allocation5], %s1025
        // Predicated region
        $region29: #{tpu_custom_call.1} parent=23 // pred_check
          %p1027 = pneg %p62
        $region30: #{tpu_custom_call.1} parent=23 // pred_check_branch
          %1029 = sbr.rel (%p1027) target = $region32
        $region31: #{tpu_custom_call.1} parent=23 // pred_region
          %s1030 = smul.u32 3, %s18
          %s1031 = ssub.s32 8, %s1030
          %p1032 = scmp.lt.s32.totalorder %s1031, 3
          %s1033 = scalar_select %p1032, %s1031, 3
          %s1034 = smul.u32 128, %s1033
          %s1036 = ssub.s32 384, %s1034
          %1037 = vsyncadd %s1023, %s1036
          %p1038 = scmp.ne.s32.totalorder 0, %s1034
          %s1039 = smul.addr %s1030, 128
          %s1040 = scalar_lea.hbm %s1, %s1039
          %s1041 = smul.u32 8, %s1033
          %s1042 = sshll.u32 %s1026, 4
          %s1043 = int_to_ptr.vmem [resolvable:$true] %s1042
          %s1044 = sshll.u32 %s1041, 4
          %1048 = dma.vmem_to_hbm [thread:$0]  (%p1038), %s1043, %s1044, %s1040, %s1023, 128, 128, 8
        $region32: #{tpu_custom_call.1} parent=23 // pred_fallthru
          _
      $region24: #{tpu_custom_call.1} parent=5 // pred_fallthru
        _
      %p1049 = scmp.le.s32.totalorder 2, %s13
      // Predicated region
      $region33: #{tpu_custom_call.1} parent=5 // pred_check
        %p1050 = pneg %p1049
      $region34: #{tpu_custom_call.1} parent=5 // pred_check_branch
        %1052 = sbr.rel (%p1050) target = $region36
      $region35: #{tpu_custom_call.1} parent=5 // pred_region
        %s1053 = ssub.s32 %s13, 2
        // Predicated region
        $region37: #{tpu_custom_call.1} parent=35 // pred_check
          %p1054 = pneg %p68
        $region38: #{tpu_custom_call.1} parent=35 // pred_check_branch
          %1056 = sbr.rel (%p1054) target = $region40
        $region39: #{tpu_custom_call.1} parent=35 // pred_region
          %s1057 = sand.u32 %s53, 1
          %s1058 = scalar_lea.sflag [#allocation4], %s1057
          %s1059 = sand.u32 %s53, 1
          %s1060 = smul.addr %s1059, 24
          %s1061 = scalar_lea.vmem [#allocation5], %s1060
          %1062 = dma.done %s1058, 384
        $region40: #{tpu_custom_call.1} parent=35 // pred_fallthru
          _
      $region36: #{tpu_custom_call.1} parent=5 // pred_fallthru
        _
    $region6: #{tpu_custom_call.1} parent=1 // loop_footer
      %s17 = sadd.s32 1, %s13
    $region7: #{tpu_custom_call.1} parent=1 // loop_footer_branch
      %12 = sbr.rel target = $region3
    $region8: #{tpu_custom_call.1} parent=1 // loop_exit
      _
    %1063 = vsyncpa [#allocation3], 1
    %s1064 = scalar_lea.sflag [#allocation3], 1
    %1065 = vsyncpa %s1064, 1
    %1066 = vsyncpa [#allocation4], 1
    %s1067 = scalar_lea.sflag [#allocation4], 1
    %1068 = vsyncpa %s1067, 1

</llo_original>
